<compile_context>
chip_gen: v6e
topology: v6e:2x2x1
jax: 0.10.0
libtpu: 0.0.40
codegen_flags: <defaults>
</compile_context>

<pallas_src>
import jax
import jax.numpy as jnp
from jax.experimental import pallas as pl
from jax.experimental.pallas import tpu as pltpu

HIDDEN_SIZE = 8
LANES = 128


def discriminator_kernel(w1_ref, b1_ref, w2_ref, b2_ref, x_ref, o_ref):
    # x_ref: [block_rows, 128] f32 (batch on lanes/sublanes)
    # w1_ref/b1_ref/w2_ref: [H] f32 in SMEM, b2_ref: [1] f32 in SMEM
    x = x_ref[...]
    acc = jnp.full_like(x, b2_ref[0])
    # Unrolled over the 8 hidden units: tanh on EUP, mul/add on VPU. No MXU.
    for j in range(HIDDEN_SIZE):
        acc = acc + jnp.tanh(x * w1_ref[j] + b1_ref[j]) * w2_ref[j]
    o_ref[...] = jax.nn.sigmoid(acc)


def discriminator_forward(x, w1, b1, w2, b2, block_rows=512):
    """x: [B, 1] f32; w1 [1,H], b1 [1,H], w2 [H,1], b2 [1,1] (Linear weights,
    stored transposed relative to torch). Returns [B, 1] f32."""
    B = x.shape[0]
    x_flat = x.reshape(-1).astype(jnp.float32)

    rows = -(-B // LANES)                       # ceil(B / 128)
    if rows <= block_rows:
        # Single block covering the whole (small) array.
        br = rows
        rows_p = rows
    else:
        # Tile the batch axis; blocks must be a multiple of 8 sublanes.
        br = max(8, (block_rows // 8) * 8)
        rows_p = -(-rows // br) * br

    Bp = rows_p * LANES
    x_pad = jnp.zeros((Bp,), jnp.float32).at[:B].set(x_flat)
    x2d = x_pad.reshape(rows_p, LANES)

    w1v = w1.reshape(HIDDEN_SIZE).astype(jnp.float32)
    b1v = b1.reshape(HIDDEN_SIZE).astype(jnp.float32)
    w2v = w2.reshape(HIDDEN_SIZE).astype(jnp.float32)
    b2v = b2.reshape(1).astype(jnp.float32)

    grid = (rows_p // br,)
    out2d = pl.pallas_call(
        discriminator_kernel,
        out_shape=jax.ShapeDtypeStruct((rows_p, LANES), jnp.float32),
        grid=grid,
        in_specs=[
            pl.BlockSpec(memory_space=pltpu.SMEM),            # w1  [H]
            pl.BlockSpec(memory_space=pltpu.SMEM),            # b1  [H]
            pl.BlockSpec(memory_space=pltpu.SMEM),            # w2  [H]
            pl.BlockSpec(memory_space=pltpu.SMEM),            # b2  [1]
            pl.BlockSpec((br, LANES), lambda i: (i, 0)),       # x   [rows_p,128]
        ],
        out_specs=pl.BlockSpec((br, LANES), lambda i: (i, 0)),
        compiler_params=pltpu.CompilerParams(
            dimension_semantics=("parallel",)),
    )(w1v, b1v, w2v, b2v, x2d)

    return out2d.reshape(-1)[:B].reshape(B, 1)


def init_params(key, hidden_size):
    # Shapes matching nn.Linear(1, hidden) and nn.Linear(hidden, 1)
    # (weights stored transposed: [in, out]).
    k1, k2, k3, k4 = jax.random.split(key, 4)
    w1 = jax.random.uniform(k1, (1, hidden_size), jnp.float32, -1.0, 1.0)
    b1 = jax.random.uniform(k2, (1, hidden_size), jnp.float32, -1.0, 1.0)
    w2 = jax.random.uniform(k3, (hidden_size, 1), jnp.float32,
                            -1.0 / hidden_size ** 0.5, 1.0 / hidden_size ** 0.5)
    b2 = jax.random.uniform(k4, (1, 1), jnp.float32,
                            -1.0 / hidden_size ** 0.5, 1.0 / hidden_size ** 0.5)
    return w1, b1, w2, b2


def _ref_forward(x, w1, b1, w2, b2):
    return jax.nn.sigmoid(jnp.tanh(x @ w1 + b1) @ w2 + b2)


if __name__ == "__main__":
    key = jax.random.PRNGKey(0)
    k_x1, k_x2, k_p = jax.random.split(key, 3)
    w1, b1, w2, b2 = init_params(k_p, HIDDEN_SIZE)

    # Small batch (as in the original module's usage).
    batch = 8
    x = jax.random.normal(k_x1, (batch, 1), jnp.float32)
    out = discriminator_forward(x, w1, b1, w2, b2)
    jax.block_until_ready(out)
    ref = _ref_forward(x, w1, b1, w2, b2)
    assert out.shape == (batch, 1)
    assert jnp.allclose(out, ref, atol=2e-5, rtol=2e-5)

    # Larger, non-multiple-of-128 batch exercising padding + multi-block grid.
    batch2 = 3000
    x2 = jax.random.normal(k_x2, (batch2, 1), jnp.float32)
    out2 = discriminator_forward(x2, w1, b1, w2, b2, block_rows=8)
    jax.block_until_ready(out2)
    ref2 = _ref_forward(x2, w1, b1, w2, b2)
    assert out2.shape == (batch2, 1)
    assert jnp.allclose(out2, ref2, atol=2e-5, rtol=2e-5)

    print("KERNEL_OK")
</pallas_src>

<mosaic_0001>
module attributes {stable_mosaic.version = 11 : i64} {
  func.func @discriminator_kernel(%arg0: i32, %arg1: memref<8xf32, #tpu.memory_space<smem>>, %arg2: memref<8xf32, #tpu.memory_space<smem>>, %arg3: memref<8xf32, #tpu.memory_space<smem>>, %arg4: memref<1xf32, #tpu.memory_space<smem>>, %arg5: memref<1x128xf32, #tpu.memory_space<vmem>>, %arg6: memref<1x128xf32, #tpu.memory_space<vmem>>) attributes {dimension_semantics = [#tpu.dimension_semantics<parallel>], iteration_bounds = array<i64: 1>, scalar_prefetch = 0 : i64, scratch_operands = 0 : i64, tpu.core_type = #tpu.core_type<tc>, window_params = [{transform_indices = @transform_0, window_bounds = array<i64: 8>}, {transform_indices = @transform_1, window_bounds = array<i64: 8>}, {transform_indices = @transform_2, window_bounds = array<i64: 8>}, {transform_indices = @transform_3, window_bounds = array<i64: 1>}, {transform_indices = @transform_4, window_bounds = array<i64: 1, 128>}, {transform_indices = @transform_5, window_bounds = array<i64: 1, 128>}]} {
    %c0 = arith.constant 0 : index
    %c0_0 = arith.constant 0 : index
    %0 = vector.load %arg5[%c0, %c0_0] : memref<1x128xf32, #tpu.memory_space<vmem>>, vector<1x128xf32>
    %c0_1 = arith.constant 0 : index
    %1 = memref.load %arg4[%c0_1] : memref<1xf32, #tpu.memory_space<smem>>
    %2 = vector.broadcast %1 : f32 to vector<1x128xf32>
    %c0_2 = arith.constant 0 : index
    %3 = memref.load %arg1[%c0_2] : memref<8xf32, #tpu.memory_space<smem>>
    %4 = vector.broadcast %3 : f32 to vector<1x128xf32>
    %5 = arith.mulf %0, %4 : vector<1x128xf32>
    %c0_3 = arith.constant 0 : index
    %6 = memref.load %arg2[%c0_3] : memref<8xf32, #tpu.memory_space<smem>>
    %7 = vector.broadcast %6 : f32 to vector<1x128xf32>
    %8 = arith.addf %5, %7 : vector<1x128xf32>
    %9 = math.tanh %8 : vector<1x128xf32>
    %c0_4 = arith.constant 0 : index
    %10 = memref.load %arg3[%c0_4] : memref<8xf32, #tpu.memory_space<smem>>
    %11 = vector.broadcast %10 : f32 to vector<1x128xf32>
    %12 = arith.mulf %9, %11 : vector<1x128xf32>
    %13 = arith.addf %2, %12 : vector<1x128xf32>
    %c1 = arith.constant 1 : index
    %14 = memref.load %arg1[%c1] : memref<8xf32, #tpu.memory_space<smem>>
    %15 = vector.broadcast %14 : f32 to vector<1x128xf32>
    %16 = arith.mulf %0, %15 : vector<1x128xf32>
    %c1_5 = arith.constant 1 : index
    %17 = memref.load %arg2[%c1_5] : memref<8xf32, #tpu.memory_space<smem>>
    %18 = vector.broadcast %17 : f32 to vector<1x128xf32>
    %19 = arith.addf %16, %18 : vector<1x128xf32>
    %20 = math.tanh %19 : vector<1x128xf32>
    %c1_6 = arith.constant 1 : index
    %21 = memref.load %arg3[%c1_6] : memref<8xf32, #tpu.memory_space<smem>>
    %22 = vector.broadcast %21 : f32 to vector<1x128xf32>
    %23 = arith.mulf %20, %22 : vector<1x128xf32>
    %24 = arith.addf %13, %23 : vector<1x128xf32>
    %c2 = arith.constant 2 : index
    %25 = memref.load %arg1[%c2] : memref<8xf32, #tpu.memory_space<smem>>
    %26 = vector.broadcast %25 : f32 to vector<1x128xf32>
    %27 = arith.mulf %0, %26 : vector<1x128xf32>
    %c2_7 = arith.constant 2 : index
    %28 = memref.load %arg2[%c2_7] : memref<8xf32, #tpu.memory_space<smem>>
    %29 = vector.broadcast %28 : f32 to vector<1x128xf32>
    %30 = arith.addf %27, %29 : vector<1x128xf32>
    %31 = math.tanh %30 : vector<1x128xf32>
    %c2_8 = arith.constant 2 : index
    %32 = memref.load %arg3[%c2_8] : memref<8xf32, #tpu.memory_space<smem>>
    %33 = vector.broadcast %32 : f32 to vector<1x128xf32>
    %34 = arith.mulf %31, %33 : vector<1x128xf32>
    %35 = arith.addf %24, %34 : vector<1x128xf32>
    %c3 = arith.constant 3 : index
    %36 = memref.load %arg1[%c3] : memref<8xf32, #tpu.memory_space<smem>>
    %37 = vector.broadcast %36 : f32 to vector<1x128xf32>
    %38 = arith.mulf %0, %37 : vector<1x128xf32>
    %c3_9 = arith.constant 3 : index
    %39 = memref.load %arg2[%c3_9] : memref<8xf32, #tpu.memory_space<smem>>
    %40 = vector.broadcast %39 : f32 to vector<1x128xf32>
    %41 = arith.addf %38, %40 : vector<1x128xf32>
    %42 = math.tanh %41 : vector<1x128xf32>
    %c3_10 = arith.constant 3 : index
    %43 = memref.load %arg3[%c3_10] : memref<8xf32, #tpu.memory_space<smem>>
    %44 = vector.broadcast %43 : f32 to vector<1x128xf32>
    %45 = arith.mulf %42, %44 : vector<1x128xf32>
    %46 = arith.addf %35, %45 : vector<1x128xf32>
    %c4 = arith.constant 4 : index
    %47 = memref.load %arg1[%c4] : memref<8xf32, #tpu.memory_space<smem>>
    %48 = vector.broadcast %47 : f32 to vector<1x128xf32>
    %49 = arith.mulf %0, %48 : vector<1x128xf32>
    %c4_11 = arith.constant 4 : index
    %50 = memref.load %arg2[%c4_11] : memref<8xf32, #tpu.memory_space<smem>>
    %51 = vector.broadcast %50 : f32 to vector<1x128xf32>
    %52 = arith.addf %49, %51 : vector<1x128xf32>
    %53 = math.tanh %52 : vector<1x128xf32>
    %c4_12 = arith.constant 4 : index
    %54 = memref.load %arg3[%c4_12] : memref<8xf32, #tpu.memory_space<smem>>
    %55 = vector.broadcast %54 : f32 to vector<1x128xf32>
    %56 = arith.mulf %53, %55 : vector<1x128xf32>
    %57 = arith.addf %46, %56 : vector<1x128xf32>
    %c5 = arith.constant 5 : index
    %58 = memref.load %arg1[%c5] : memref<8xf32, #tpu.memory_space<smem>>
    %59 = vector.broadcast %58 : f32 to vector<1x128xf32>
    %60 = arith.mulf %0, %59 : vector<1x128xf32>
    %c5_13 = arith.constant 5 : index
    %61 = memref.load %arg2[%c5_13] : memref<8xf32, #tpu.memory_space<smem>>
    %62 = vector.broadcast %61 : f32 to vector<1x128xf32>
    %63 = arith.addf %60, %62 : vector<1x128xf32>
    %64 = math.tanh %63 : vector<1x128xf32>
    %c5_14 = arith.constant 5 : index
    %65 = memref.load %arg3[%c5_14] : memref<8xf32, #tpu.memory_space<smem>>
    %66 = vector.broadcast %65 : f32 to vector<1x128xf32>
    %67 = arith.mulf %64, %66 : vector<1x128xf32>
    %68 = arith.addf %57, %67 : vector<1x128xf32>
    %c6 = arith.constant 6 : index
    %69 = memref.load %arg1[%c6] : memref<8xf32, #tpu.memory_space<smem>>
    %70 = vector.broadcast %69 : f32 to vector<1x128xf32>
    %71 = arith.mulf %0, %70 : vector<1x128xf32>
    %c6_15 = arith.constant 6 : index
    %72 = memref.load %arg2[%c6_15] : memref<8xf32, #tpu.memory_space<smem>>
    %73 = vector.broadcast %72 : f32 to vector<1x128xf32>
    %74 = arith.addf %71, %73 : vector<1x128xf32>
    %75 = math.tanh %74 : vector<1x128xf32>
    %c6_16 = arith.constant 6 : index
    %76 = memref.load %arg3[%c6_16] : memref<8xf32, #tpu.memory_space<smem>>
    %77 = vector.broadcast %76 : f32 to vector<1x128xf32>
    %78 = arith.mulf %75, %77 : vector<1x128xf32>
    %79 = arith.addf %68, %78 : vector<1x128xf32>
    %c7 = arith.constant 7 : index
    %80 = memref.load %arg1[%c7] : memref<8xf32, #tpu.memory_space<smem>>
    %81 = vector.broadcast %80 : f32 to vector<1x128xf32>
    %82 = arith.mulf %0, %81 : vector<1x128xf32>
    %c7_17 = arith.constant 7 : index
    %83 = memref.load %arg2[%c7_17] : memref<8xf32, #tpu.memory_space<smem>>
    %84 = vector.broadcast %83 : f32 to vector<1x128xf32>
    %85 = arith.addf %82, %84 : vector<1x128xf32>
    %86 = math.tanh %85 : vector<1x128xf32>
    %c7_18 = arith.constant 7 : index
    %87 = memref.load %arg3[%c7_18] : memref<8xf32, #tpu.memory_space<smem>>
    %88 = vector.broadcast %87 : f32 to vector<1x128xf32>
    %89 = arith.mulf %86, %88 : vector<1x128xf32>
    %90 = arith.addf %79, %89 : vector<1x128xf32>
    %91 = arith.negf %90 : vector<1x128xf32>
    %92 = math.exp %91 : vector<1x128xf32>
    %cst = arith.constant 1.000000e+00 : f32
    %93 = vector.broadcast %cst : f32 to vector<1x128xf32>
    %94 = arith.addf %93, %92 : vector<1x128xf32>
    %95 = arith.divf %93, %94 : vector<1x128xf32>
    %c0_19 = arith.constant 0 : index
    %c0_20 = arith.constant 0 : index
    %96 = vector.load %arg6[%c0_19, %c0_20] : memref<1x128xf32, #tpu.memory_space<vmem>>, vector<1x128xf32>
    tpu.vector_store %arg6[%c0_19, %c0_20], %95 {strides = array<i32>} : memref<1x128xf32, #tpu.memory_space<vmem>>, vector<1x128xf32>,
    return
  }
  func.func @transform_0(%arg0: i32) -> i32 {
    %c0_i32 = arith.constant 0 : i32
    %c0_i32_0 = arith.constant 0 : i32
    return %c0_i32 : i32
  }
  func.func @transform_1(%arg0: i32) -> i32 {
    %c0_i32 = arith.constant 0 : i32
    %c0_i32_0 = arith.constant 0 : i32
    return %c0_i32 : i32
  }
  func.func @transform_2(%arg0: i32) -> i32 {
    %c0_i32 = arith.constant 0 : i32
    %c0_i32_0 = arith.constant 0 : i32
    return %c0_i32 : i32
  }
  func.func @transform_3(%arg0: i32) -> i32 {
    %c0_i32 = arith.constant 0 : i32
    %c0_i32_0 = arith.constant 0 : i32
    return %c0_i32 : i32
  }
  func.func @transform_4(%arg0: i32) -> (i32, i32) {
    %c0_i32 = arith.constant 0 : i32
    %c0_i32_0 = arith.constant 0 : i32
    return %arg0, %c0_i32 : i32, i32
  }
  func.func @transform_5(%arg0: i32) -> (i32, i32) {
    %c0_i32 = arith.constant 0 : i32
    %c0_i32_0 = arith.constant 0 : i32
    return %arg0, %c0_i32 : i32, i32
  }
}

</mosaic_0001>

<llo_original>
// kernel: tpu_custom_call.1
$region0: #{tpu_custom_call.1}
  #allocation0 [shape = 'u32[]', space=smem, size = 0x4, offset = 0x4, fixed_abs, tag = 'smem constant byte address 0x4 - core index']
  #allocation1 [shape = 'u32[144,128]{1,0:T(1,128)}', space=vmem, size = 0x12000, scoped, tag = 'internal scratch']
  #allocation2 [shape = 'f32[1]{0:T(128)S(6)}', space=smem, size = 0x200, scoped, tag = 'scoped memory for tpu_custom_call.1']
  %s0 = inlined_call_operand.vmem [shape: f32[8], index: 0, kind: input, shape index: {}]
  %s1 = inlined_call_operand.vmem [shape: f32[8], index: 1, kind: input, shape index: {}]
  %s2 = inlined_call_operand.vmem [shape: f32[8], index: 2, kind: input, shape index: {}]
  %s3 = inlined_call_operand.<no memory space> [shape: f32[1], index: 3, kind: input, shape index: {}]
  %s4 = inlined_call_operand.vmem [shape: f32[1,128], index: 4, kind: input, shape index: {}]
  %s5 = inlined_call_operand.hbm [shape: f32[1,128], index: 5, kind: output, shape index: {}]
  %s6 = sld [smem:[#allocation0]]
  $region42: #{tpu_custom_call.1} parent=0
    _
  %s8 = ssub.s32 1, %s6
  %s9 = scalar_select 0, %s8, %s6
  %10 = sst [smem:[#allocation2]] %s3
  $region1: #{tpu_custom_call.1} parent=0
    #allocation3 [shape = 'u8[512]{0}', space=smem, size = 0x200, scoped, tag = 'input window, operand 0, single buffered']
    #allocation4 [shape = 's32[1]{0}', space=sflag, size = 0x4, scoped, tag = 'scoped memory for tpu_custom_call.1']
    #allocation5 [shape = 's32[1]{0}', space=sflag, size = 0x4, scoped, tag = 'scoped memory for tpu_custom_call.1']
    #allocation6 [shape = 'u8[512]{0}', space=smem, size = 0x200, scoped, tag = 'input window, operand 1, single buffered']
    #allocation7 [shape = 's32[1]{0}', space=sflag, size = 0x4, scoped, tag = 'scoped memory for tpu_custom_call.1']
    #allocation8 [shape = 'u8[512]{0}', space=smem, size = 0x200, scoped, tag = 'input window, operand 2, single buffered']
    #allocation9 [shape = 'u8[512]{0}', space=vmem, size = 0x400, scoped, tag = 'output window, operand 0, single buffered']
    %11 = vsyncpa [#allocation5], 0
    %12 = vsyncpa [#allocation7], 0
    %13 = vsyncpa [#allocation4], 0
    // Predicated region
    $region2: #{tpu_custom_call.1} parent=1 // pred_check
      _
    $region3: #{tpu_custom_call.1} parent=1 // pred_check_branch
      %15 = sbr.rel (0) target = $region5
    $region4: #{tpu_custom_call.1} parent=1 // pred_region
      %s17 = ssub.s32 16, 16
      %18 = vsyncadd [#allocation5], %s17
      %s20 = sshll.u32 %s0, 4
      %s21 = int_to_ptr.vmem [resolvable:$true] %s20
      %23 = dma.vmem_to_smem %s21, 16, [#allocation3], [#allocation5]
    $region5: #{tpu_custom_call.1} parent=1 // pred_fallthru
      _
    // Predicated region
    $region6: #{tpu_custom_call.1} parent=1 // pred_check
      _
    $region7: #{tpu_custom_call.1} parent=1 // pred_check_branch
      %25 = sbr.rel (0) target = $region9
    $region8: #{tpu_custom_call.1} parent=1 // pred_region
      %s27 = ssub.s32 16, 16
      %28 = vsyncadd [#allocation7], %s27
      %s30 = sshll.u32 %s1, 4
      %s31 = int_to_ptr.vmem [resolvable:$true] %s30
      %33 = dma.vmem_to_smem %s31, 16, [#allocation6], [#allocation7]
    $region9: #{tpu_custom_call.1} parent=1 // pred_fallthru
      _
    // Predicated region
    $region10: #{tpu_custom_call.1} parent=1 // pred_check
      _
    $region11: #{tpu_custom_call.1} parent=1 // pred_check_branch
      %35 = sbr.rel (0) target = $region13
    $region12: #{tpu_custom_call.1} parent=1 // pred_region
      %s37 = ssub.s32 16, 16
      %38 = vsyncadd [#allocation7], %s37
      %s40 = sshll.u32 %s2, 4
      %s41 = int_to_ptr.vmem [resolvable:$true] %s40
      %43 = dma.vmem_to_smem %s41, 16, [#allocation8], [#allocation7]
    $region13: #{tpu_custom_call.1} parent=1 // pred_fallthru
      _
    // Predicated region
    $region14: #{tpu_custom_call.1} parent=1 // pred_check
      _
    $region15: #{tpu_custom_call.1} parent=1 // pred_check_branch
      %45 = sbr.rel (0) target = $region17
    $region16: #{tpu_custom_call.1} parent=1 // pred_region
      _
    $region17: #{tpu_custom_call.1} parent=1 // pred_fallthru
      _
    // Predicated region
    $region18: #{tpu_custom_call.1} parent=1 // pred_check
      _
    $region19: #{tpu_custom_call.1} parent=1 // pred_check_branch
      %47 = sbr.rel (0) target = $region21
    $region20: #{tpu_custom_call.1} parent=1 // pred_region
      _
    $region21: #{tpu_custom_call.1} parent=1 // pred_fallthru
      _
    // Predicated region
    $region22: #{tpu_custom_call.1} parent=1 // pred_check
      _
    $region23: #{tpu_custom_call.1} parent=1 // pred_check_branch
      %49 = sbr.rel (0) target = $region25
    $region24: #{tpu_custom_call.1} parent=1 // pred_region
      %50 = dma.done [#allocation5], 16
    $region25: #{tpu_custom_call.1} parent=1 // pred_fallthru
      _
    // Predicated region
    $region26: #{tpu_custom_call.1} parent=1 // pred_check
      _
    $region27: #{tpu_custom_call.1} parent=1 // pred_check_branch
      %52 = sbr.rel (0) target = $region29
    $region28: #{tpu_custom_call.1} parent=1 // pred_region
      %53 = dma.done [#allocation7], 16
    $region29: #{tpu_custom_call.1} parent=1 // pred_fallthru
      _
    // Predicated region
    $region30: #{tpu_custom_call.1} parent=1 // pred_check
      _
    $region31: #{tpu_custom_call.1} parent=1 // pred_check_branch
      %55 = sbr.rel (0) target = $region33
    $region32: #{tpu_custom_call.1} parent=1 // pred_region
      %56 = dma.done [#allocation7], 16
    $region33: #{tpu_custom_call.1} parent=1 // pred_fallthru
      _
    %57 = sfence
    %v58 = vld [vmem:[%s4] sm:$0x1]
    %s59 = sld [smem:[#allocation2]]
    %v60 = vstv %s59
    %s61 = sld [smem:[#allocation3]]
    %v62 = vstv %s61
    %v63 = vmul.f32 %v58, %v62
    %s64 = sld [smem:[#allocation6]]
    %v65 = vstv %s64
    %v66 = vadd.f32 %v63, %v65
    %v67 = vtanh.pop %v66
    %s68 = sld [smem:[#allocation8]]
    %v69 = vstv %s68
    %v70 = vmul.f32 %v67, %v69
    %v71 = vadd.f32 %v60, %v70
    %s72 = sld [smem:[#allocation3 + $0x1]]
    %v73 = vstv %s72
    %v74 = vmul.f32 %v58, %v73
    %s75 = sld [smem:[#allocation6 + $0x1]]
    %v76 = vstv %s75
    %v77 = vadd.f32 %v74, %v76
    %v78 = vtanh.pop %v77
    %s79 = sld [smem:[#allocation8 + $0x1]]
    %v80 = vstv %s79
    %v81 = vmul.f32 %v78, %v80
    %v82 = vadd.f32 %v71, %v81
    %s83 = sld [smem:[#allocation3 + $0x2]]
    %v84 = vstv %s83
    %v85 = vmul.f32 %v58, %v84
    %s86 = sld [smem:[#allocation6 + $0x2]]
    %v87 = vstv %s86
    %v88 = vadd.f32 %v85, %v87
    %v89 = vtanh.pop %v88
    %s90 = sld [smem:[#allocation8 + $0x2]]
    %v91 = vstv %s90
    %v92 = vmul.f32 %v89, %v91
    %v93 = vadd.f32 %v82, %v92
    %s94 = sld [smem:[#allocation3 + $0x3]]
    %v95 = vstv %s94
    %v96 = vmul.f32 %v58, %v95
    %s97 = sld [smem:[#allocation6 + $0x3]]
    %v98 = vstv %s97
    %v99 = vadd.f32 %v96, %v98
    %v100 = vtanh.pop %v99
    %s101 = sld [smem:[#allocation8 + $0x3]]
    %v102 = vstv %s101
    %v103 = vmul.f32 %v100, %v102
    %v104 = vadd.f32 %v93, %v103
    %s105 = sld [smem:[#allocation3 + $0x4]]
    %v106 = vstv %s105
    %v107 = vmul.f32 %v58, %v106
    %s108 = sld [smem:[#allocation6 + $0x4]]
    %v109 = vstv %s108
    %v110 = vadd.f32 %v107, %v109
    %v111 = vtanh.pop %v110
    %s112 = sld [smem:[#allocation8 + $0x4]]
    %v113 = vstv %s112
    %v114 = vmul.f32 %v111, %v113
    %v115 = vadd.f32 %v104, %v114
    %s116 = sld [smem:[#allocation3 + $0x5]]
    %v117 = vstv %s116
    %v118 = vmul.f32 %v58, %v117
    %s119 = sld [smem:[#allocation6 + $0x5]]
    %v120 = vstv %s119
    %v121 = vadd.f32 %v118, %v120
    %v122 = vtanh.pop %v121
    %s123 = sld [smem:[#allocation8 + $0x5]]
    %v124 = vstv %s123
    %v125 = vmul.f32 %v122, %v124
    %v126 = vadd.f32 %v115, %v125
    %s127 = sld [smem:[#allocation3 + $0x6]]
    %v128 = vstv %s127
    %v129 = vmul.f32 %v58, %v128
    %s130 = sld [smem:[#allocation6 + $0x6]]
    %v131 = vstv %s130
    %v132 = vadd.f32 %v129, %v131
    %v133 = vtanh.pop %v132
    %s134 = sld [smem:[#allocation8 + $0x6]]
    %v135 = vstv %s134
    %v136 = vmul.f32 %v133, %v135
    %v137 = vadd.f32 %v126, %v136
    %s138 = sld [smem:[#allocation3 + $0x7]]
    %v139 = vstv %s138
    %v140 = vmul.f32 %v58, %v139
    %s141 = sld [smem:[#allocation6 + $0x7]]
    %v142 = vstv %s141
    %v143 = vadd.f32 %v140, %v142
    %v144 = vtanh.pop %v143
    %s145 = sld [smem:[#allocation8 + $0x7]]
    %v146 = vstv %s145
    %v147 = vmul.f32 %v144, %v146
    %v148 = vadd.f32 %v137, %v147
    %v149 = vxor.u32 %v148, 2147483648
    %v150 = vmul.f32 %v149, 1.442695
    %v151 = vpow.pop %v150
    %v152 = vadd.f32 %v151, 1.0
    %v153 = vrcp.pop %v152
    %v154 = vmul.f32 1.0, %v153
    %155 = vst [vmem:[#allocation9] sm:$0x1] %v154
    // Predicated region
    $region34: #{tpu_custom_call.1} parent=1 // pred_check
      _
    $region35: #{tpu_custom_call.1} parent=1 // pred_check_branch
      %157 = sbr.rel (0) target = $region37
    $region36: #{tpu_custom_call.1} parent=1 // pred_region
      %s159 = ssub.s32 16, 16
      %160 = vsyncadd [#allocation4], %s159
      %s162 = sshll.u32 [#allocation9], 4
      %s163 = int_to_ptr.vmem [resolvable:$true] %s162
      %165 = dma.vmem_to_hbm [thread:$0]  %s163, 16, %s5, [#allocation4]
    $region37: #{tpu_custom_call.1} parent=1 // pred_fallthru
      _
    // Predicated region
    $region38: #{tpu_custom_call.1} parent=1 // pred_check
      _
    $region39: #{tpu_custom_call.1} parent=1 // pred_check_branch
      %167 = sbr.rel (0) target = $region41
    $region40: #{tpu_custom_call.1} parent=1 // pred_region
      %168 = dma.done [#allocation4], 16
    $region41: #{tpu_custom_call.1} parent=1 // pred_fallthru
      _
    %169 = vsyncpa [#allocation4], 1
    %170 = vsyncpa [#allocation5], 1
    %171 = vsyncpa [#allocation7], 1

</llo_original>
